<compile_context>
chip_gen: v6e
topology: v6e:2x2x1
jax: 0.10.0
libtpu: 0.0.40
codegen_flags: <defaults>
</compile_context>

<pallas_src>
import functools
import math

import jax
import jax.numpy as jnp
from jax.experimental import pallas as pl
from jax.experimental.pallas import tpu as pltpu

_MIB = 1 << 20


# ----------------------------------------------------------------------------
# Hardware-derived budget
# ----------------------------------------------------------------------------
def _tpu_vmem_info():
    """Returns (per-TensorCore VMEM capacity in bytes, assume-multi-TC?)."""
    try:
        cap = int(pltpu.get_tpu_info().vmem_capacity_bytes)
    except Exception:
        cap = 64 * _MIB  # conservative (v7x-sized) fallback
    # Heuristic: 64 MiB/TC parts (v7x) have 2 TensorCores that can split a
    # "parallel" grid axis; 128 MiB parts (v5e/v6e) have a single TensorCore,
    # where forcing extra grid steps only adds per-step overhead.
    multi_tc = cap <= 64 * _MIB + _MIB
    return cap, multi_tc


def _pick_l_chunk(L):
    """L-chunk for the f32-accumulated reduction: bounds the f32 temp and keeps
    the static unroll count small (<= ~8 chunks)."""
    chunk = max(1024, -(-L // 8))
    chunk = -(-chunk // 128) * 128
    return min(chunk, max(L, 1))


# ----------------------------------------------------------------------------
# Fused one-pass kernel: one (Bt, C, L) slab resident per grid step.
# ----------------------------------------------------------------------------
def _se_fused_kernel(x_ref, wdt_ref, bd_ref, wut_ref, bu_ref, o_ref, *, l_chunk):
    bt, C, L = x_ref.shape

    # --- squeeze: f32-accumulated mean over L, chunked (no full-tile f32 copy)
    acc = jnp.zeros((bt, C), jnp.float32)
    n_chunks = (L + l_chunk - 1) // l_chunk          # static
    for ci in range(n_chunks):
        lo = ci * l_chunk
        sz = min(l_chunk, L - lo)
        acc = acc + jnp.sum(x_ref[:, :, lo:lo + sz].astype(jnp.float32), axis=-1)
    mean = acc * (1.0 / L)                           # (bt, C) f32

    # --- gate: two 1x1 convs as (bt,C)@(C,Cr) / (bt,Cr)@(Cr,C) on the MXU ---
    wdt = wdt_ref[...]                               # (C, Cr), native dtype
    wut = wut_ref[...]                               # (Cr, C)
    h = jnp.dot(mean.astype(wdt.dtype), wdt,
                preferred_element_type=jnp.float32) + bd_ref[...].astype(jnp.float32)
    h = jnp.where(h >= 0, h, 0.01 * h)               # LeakyReLU (slope 0.01)
    z = jnp.dot(h.astype(wut.dtype), wut,
                preferred_element_type=jnp.float32) + bu_ref[...].astype(jnp.float32)
    coef = jax.nn.sigmoid(z)                         # (bt, C) f32

    # --- excite: broadcast multiply in x's native dtype (coef cast down once)
    o_ref[...] = coef[:, :, None].astype(o_ref.dtype) * x_ref[...]


def _plan_fused_bt(B, C, L, itemsize, usable_bytes, weight_bytes, multi_tc, l_chunk):
    """Largest batch tile whose live VMEM fits the budget, or None."""
    per_batch = (4 * C * L * itemsize                # 2 input + 2 output pipeline buffers
                 + C * l_chunk * (4 + itemsize)      # f32 reduction chunk (+ slice copy)
                 + 256 * C)                          # mean/coef/acc slack
    avail = usable_bytes - 2 * weight_bytes - 2 * _MIB
    if avail < per_batch:
        return None
    bt = int(min(B, avail // per_batch))
    if multi_tc and B >= 2:
        # Give each of the two TensorCores an equal share: even step count.
        steps = max(2, pl.cdiv(B, bt))
        if steps % 2:
            steps += 1
        bt = min(bt, pl.cdiv(B, steps))
    return max(1, int(bt))


def _se_block_fused(x, w_down, b_down, w_up, b_up, bt, l_chunk, usable_bytes):
    B, C, L = x.shape
    Cr = w_down.shape[0]
    itemsize = jnp.dtype(x.dtype).itemsize
    grid = (pl.cdiv(B, bt),)                         # ragged last block is fine

    # Weights stay in their native dtype (cast/accumulate happens in-kernel).
    wd_t = w_down.T                                  # (C, Cr)
    wu_t = w_up.T                                    # (Cr, C)
    bd2 = b_down.reshape(1, Cr)
    bu2 = b_up.reshape(1, C)

    weight_bytes = int(wd_t.size * jnp.dtype(wd_t.dtype).itemsize
                       + wu_t.size * jnp.dtype(wu_t.dtype).itemsize
                       + (C + Cr) * jnp.dtype(b_down.dtype).itemsize)
    need = (4 * bt * C * L * itemsize
            + bt * C * l_chunk * (4 + itemsize)
            + 2 * weight_bytes + 2 * _MIB)
    vmem_limit = int(min(max(need, 16 * _MIB), usable_bytes))

    cost = pl.CostEstimate(
        flops=int(2 * B * C * L + 4 * B * C * Cr + 4 * B * C),
        transcendentals=int(B * C),
        bytes_accessed=int(2 * B * C * L * itemsize + weight_bytes),
    )

    return pl.pallas_call(
        functools.partial(_se_fused_kernel, l_chunk=l_chunk),
        out_shape=jax.ShapeDtypeStruct((B, C, L), x.dtype),
        grid_spec=pltpu.PrefetchScalarGridSpec(
            num_scalar_prefetch=0,
            grid=grid,
            in_specs=[
                pl.BlockSpec((bt, C, L), lambda b: (b, 0, 0)),   # x batch tile
                pl.BlockSpec((C, Cr), lambda b: (0, 0)),         # W_down^T (resident)
                pl.BlockSpec((1, Cr), lambda b: (0, 0)),         # b_down
                pl.BlockSpec((Cr, C), lambda b: (0, 0)),         # W_up^T
                pl.BlockSpec((1, C), lambda b: (0, 0)),          # b_up
            ],
            out_specs=pl.BlockSpec((bt, C, L), lambda b: (b, 0, 0)),
        ),
        compiler_params=pltpu.CompilerParams(
            dimension_semantics=("parallel",),
            vmem_limit_bytes=vmem_limit,
        ),
        cost_estimate=cost,
    )(x, wd_t, bd2, wu_t, bu2)


# ----------------------------------------------------------------------------
# Two-pass fallback (single (C, L) slab does not fit the VMEM budget):
#   pass 1: L-tiled f32 reduce into per-(B, C) sums (accumulator resident)
#   tiny gate ((B,C)-sized matmuls + activations) in plain JAX between passes
#   pass 2: L-tiled lane-dense excite multiply in x's native dtype
# ----------------------------------------------------------------------------
def _squeeze_sum_kernel(x_ref, sum_ref, *, length, block_len):
    l = pl.program_id(1)
    n_l = pl.num_programs(1)

    @pl.when(l == 0)
    def _():
        sum_ref[...] = jnp.zeros_like(sum_ref)

    @pl.when(l < n_l - 1)                            # full tiles: no tail mask
    def _():
        sum_ref[0] += jnp.sum(x_ref[0].astype(jnp.float32), axis=-1, keepdims=True)

    @pl.when(l == n_l - 1)                           # (possibly ragged) last tile
    def _():
        xf = x_ref[0].astype(jnp.float32)            # (C, lt)
        offs = l * block_len + jax.lax.broadcasted_iota(jnp.int32, xf.shape, 1)
        xf = jnp.where(offs < length, xf, 0.0)
        sum_ref[0] += jnp.sum(xf, axis=-1, keepdims=True)


def _excite_kernel(coef_ref, x_ref, o_ref):
    # Multiply in x's dtype; coef (C,1) cast down once per tile.
    o_ref[0] = coef_ref[0].astype(o_ref.dtype) * x_ref[0]


def _se_block_two_pass(x, w_down, b_down, w_up, b_up, usable_bytes, block_len=None):
    B, C, L = x.shape
    itemsize = jnp.dtype(x.dtype).itemsize
    f32 = jnp.float32

    if block_len is not None:
        lt = int(block_len)
    else:
        # Real live-buffer multiplier: max(reduce: 2 in bufs + f32 tile,
        #                                  excite: 2 in + 2 out bufs); cap 4K lanes.
        per_lane = C * max(2 * itemsize + 4, 4 * itemsize)
        lt = int((usable_bytes - 2 * _MIB) // max(per_lane, 1))
        lt = max(128, (lt // 128) * 128)
        lt = min(lt, 4096)
    if lt >= L:
        lt = L
    n_l = pl.cdiv(L, lt)
    grid = (B, n_l)

    reduce_need = C * lt * (2 * itemsize + 4) + 8 * C + 2 * _MIB
    excite_need = 4 * C * lt * itemsize + 8 * C + 2 * _MIB
    reduce_limit = int(min(max(reduce_need, 16 * _MIB), usable_bytes))
    excite_limit = int(min(max(excite_need, 16 * _MIB), usable_bytes))

    sums = pl.pallas_call(
        functools.partial(_squeeze_sum_kernel, length=L, block_len=lt),
        out_shape=jax.ShapeDtypeStruct((B, C, 1), f32),
        grid_spec=pltpu.PrefetchScalarGridSpec(
            num_scalar_prefetch=0,
            grid=grid,
            in_specs=[pl.BlockSpec((1, C, lt), lambda b, l: (b, 0, l))],
            out_specs=pl.BlockSpec((1, C, 1), lambda b, l: (b, 0, 0)),
        ),
        compiler_params=pltpu.CompilerParams(
            dimension_semantics=("parallel", "arbitrary"),
            vmem_limit_bytes=reduce_limit,
        ),
        cost_estimate=pl.CostEstimate(
            flops=int(B * C * L), transcendentals=0,
            bytes_accessed=int(B * C * L * itemsize + B * C * 4)),
    )(x)

    # Tiny per-batch gate ((B, C)-sized) between the two streaming passes.
    mean = sums[:, :, 0] * (1.0 / L)                 # (B, C) f32
    h = mean @ w_down.astype(f32).T + b_down.astype(f32)[None, :]
    h = jnp.where(h >= 0, h, 0.01 * h)
    z = h @ w_up.astype(f32).T + b_up.astype(f32)[None, :]
    coef = jax.nn.sigmoid(z)[:, :, None]             # (B, C, 1) f32

    return pl.pallas_call(
        _excite_kernel,
        out_shape=jax.ShapeDtypeStruct((B, C, L), x.dtype),
        grid_spec=pltpu.PrefetchScalarGridSpec(
            num_scalar_prefetch=0,
            grid=grid,
            in_specs=[
                pl.BlockSpec((1, C, 1), lambda b, l: (b, 0, 0)),   # coef (resident over l)
                pl.BlockSpec((1, C, lt), lambda b, l: (b, 0, l)),  # x L-tile
            ],
            out_specs=pl.BlockSpec((1, C, lt), lambda b, l: (b, 0, l)),
        ),
        compiler_params=pltpu.CompilerParams(
            dimension_semantics=("parallel", "parallel"),
            vmem_limit_bytes=excite_limit,
        ),
        cost_estimate=pl.CostEstimate(
            flops=int(B * C * L), transcendentals=0,
            bytes_accessed=int(2 * B * C * L * itemsize + B * C * 4)),
    )(coef, x)


# ----------------------------------------------------------------------------
# Public wrapper
# ----------------------------------------------------------------------------
def se_block(x, w_down, b_down, w_up, b_up, *,
             block_batch=None, block_len=None, force_two_pass=False,
             vmem_budget_bytes=None):
    """SEBlock forward. x: (B, C, L); w_down: (Cr, C); b_down: (Cr,); w_up: (C, Cr); b_up: (C,)."""
    B, C, L = x.shape
    Cr = w_down.shape[0]
    itemsize = jnp.dtype(x.dtype).itemsize

    cap, multi_tc = _tpu_vmem_info()
    usable = int(vmem_budget_bytes) if vmem_budget_bytes is not None else (cap * 3) // 4
    weight_bytes = int(w_down.size * jnp.dtype(w_down.dtype).itemsize
                       + w_up.size * jnp.dtype(w_up.dtype).itemsize
                       + (C + Cr) * jnp.dtype(b_down.dtype).itemsize)

    if force_two_pass:
        return _se_block_two_pass(x, w_down, b_down, w_up, b_up, usable,
                                  block_len=block_len)

    l_chunk = _pick_l_chunk(L)
    if block_batch is not None:
        bt = int(min(max(int(block_batch), 1), B))
    else:
        bt = _plan_fused_bt(B, C, L, itemsize, usable, weight_bytes, multi_tc, l_chunk)
    if bt is None:
        return _se_block_two_pass(x, w_down, b_down, w_up, b_up, usable,
                                  block_len=block_len)
    return _se_block_fused(x, w_down, b_down, w_up, b_up, bt, l_chunk, usable)


def se_block_ref(x, w_down, b_down, w_up, b_up):
    """Pure-JAX reference mirroring the PyTorch forward."""
    mean = jnp.mean(x, axis=-1, keepdims=True)                      # (B, C, 1)
    h = jnp.einsum("oc,bcl->bol", w_down, mean) + b_down[None, :, None]
    h = jnp.where(h >= 0, h, 0.01 * h)
    z = jnp.einsum("oc,bcl->bol", w_up, h) + b_up[None, :, None]
    coef = jax.nn.sigmoid(z)                                        # (B, C, 1)
    return coef * x


if __name__ == "__main__":
    # Small shapes consistent with the module: batch=4, channels=8, length=128,
    # reduction=2 (L a multiple of 128 so the excite store is lane-dense).
    B, C, L, reduction = 4, 8, 128, 2
    Cr = C // reduction

    key = jax.random.PRNGKey(0)
    kx, kwd, kbd, kwu, kbu, kx2 = jax.random.split(key, 6)

    x = jax.random.normal(kx, (B, C, L), dtype=jnp.float32)
    # Conv1d(in_chan, in_chan//r, 1) -> weight (Cr, C, 1); trailing 1 dropped.
    w_down = jax.random.normal(kwd, (Cr, C), dtype=jnp.float32) * 0.1
    b_down = jax.random.normal(kbd, (Cr,), dtype=jnp.float32) * 0.1
    # Conv1d(in_chan//r, in_chan, 1) -> weight (C, Cr, 1)
    w_up = jax.random.normal(kwu, (C, Cr), dtype=jnp.float32) * 0.1
    b_up = jax.random.normal(kbu, (C,), dtype=jnp.float32) * 0.1

    # 1) fused one-pass path (batch tile derived from the per-generation VMEM budget)
    out = jax.block_until_ready(se_block(x, w_down, b_down, w_up, b_up))
    ref = se_block_ref(x, w_down, b_down, w_up, b_up)
    assert out.shape == (B, C, L)
    assert jnp.allclose(out, ref, atol=1e-5, rtol=1e-5), "fused path mismatch vs reference"

    # 2) bf16 params/activations: native-dtype excite, f32 accumulation in-kernel
    out_bf16 = jax.block_until_ready(
        se_block(x.astype(jnp.bfloat16),
                 w_down.astype(jnp.bfloat16), b_down.astype(jnp.bfloat16),
                 w_up.astype(jnp.bfloat16), b_up.astype(jnp.bfloat16)))
    assert out_bf16.dtype == jnp.bfloat16
    assert jnp.allclose(out_bf16.astype(jnp.float32), ref, atol=5e-2, rtol=5e-2), \
        "bf16 fused path mismatch vs reference"

    # 3) forced two-pass (reduce -> gate -> excite) fallback, ragged final L tile
    L2 = 320
    x2 = jax.random.normal(kx2, (2, C, L2), dtype=jnp.float32)
    out2 = jax.block_until_ready(
        se_block(x2, w_down, b_down, w_up, b_up, force_two_pass=True, block_len=128))
    ref2 = se_block_ref(x2, w_down, b_down, w_up, b_up)
    assert out2.shape == (2, C, L2)
    assert jnp.allclose(out2, ref2, atol=1e-5, rtol=1e-5), "two-pass path mismatch vs reference"

    print("KERNEL_OK")
</pallas_src>

<mosaic_0001>
module attributes {stable_mosaic.version = 11 : i64} {
  func.func @_se_fused_kernel(%arg0: i32, %arg1: memref<2x8x128xf32, #tpu.memory_space<vmem>>, %arg2: memref<8x4xf32, #tpu.memory_space<vmem>>, %arg3: memref<1x4xf32, #tpu.memory_space<vmem>>, %arg4: memref<4x8xf32, #tpu.memory_space<vmem>>, %arg5: memref<1x8xf32, #tpu.memory_space<vmem>>, %arg6: memref<2x8x128xf32, #tpu.memory_space<vmem>>) attributes {dimension_semantics = [#tpu.dimension_semantics<parallel>], iteration_bounds = array<i64: 2>, scalar_prefetch = 0 : i64, scratch_operands = 0 : i64, tpu.core_type = #tpu.core_type<tc>, window_params = [{transform_indices = @transform_0, window_bounds = array<i64: 2, 8, 128>}, {pipeline_mode = #tpu.pipeline_mode<synchronous>, transform_indices = @transform_1, window_bounds = array<i64: 8, 4>}, {pipeline_mode = #tpu.pipeline_mode<synchronous>, transform_indices = @transform_2, window_bounds = array<i64: 1, 4>}, {pipeline_mode = #tpu.pipeline_mode<synchronous>, transform_indices = @transform_3, window_bounds = array<i64: 4, 8>}, {pipeline_mode = #tpu.pipeline_mode<synchronous>, transform_indices = @transform_4, window_bounds = array<i64: 1, 8>}, {transform_indices = @transform_5, window_bounds = array<i64: 2, 8, 128>}]} {
    %cst = arith.constant 0.000000e+00 : f32
    %0 = vector.broadcast %cst : f32 to vector<2x8xf32>
    %c0 = arith.constant 0 : index
    %c0_0 = arith.constant 0 : index
    %c0_1 = arith.constant 0 : index
    %1 = vector.load %arg1[%c0, %c0_0, %c0_1] : memref<2x8x128xf32, #tpu.memory_space<vmem>>, vector<2x8x128xf32>
    %cst_2 = arith.constant dense<0.000000e+00> : vector<2x8xf32>
    %2 = vector.multi_reduction <add>, %1, %cst_2 [2] : vector<2x8x128xf32> to vector<2x8xf32>
    %3 = arith.addf %0, %2 : vector<2x8xf32>
    %cst_3 = arith.constant 7.812500e-03 : f32
    %4 = vector.broadcast %cst_3 : f32 to vector<2x8xf32>
    %5 = arith.mulf %3, %4 : vector<2x8xf32>
    %c0_4 = arith.constant 0 : index
    %c0_5 = arith.constant 0 : index
    %6 = vector.load %arg2[%c0_4, %c0_5] : memref<8x4xf32, #tpu.memory_space<vmem>>, vector<8x4xf32>
    %c0_6 = arith.constant 0 : index
    %c0_7 = arith.constant 0 : index
    %7 = vector.load %arg4[%c0_6, %c0_7] : memref<4x8xf32, #tpu.memory_space<vmem>>, vector<4x8xf32>
    %cst_8 = arith.constant dense<0.000000e+00> : vector<2x4xf32>
    %8 = tpu.matmul %5, %6, %cst_8 {dimension_numbers = #tpu.dot_dimension_numbers<[1], [0], [0], [1], [0, 0, 1, 1], [], []>} : vector<2x8xf32>, vector<8x4xf32>, vector<2x4xf32> -> vector<2x4xf32>
    %c0_9 = arith.constant 0 : index
    %c0_10 = arith.constant 0 : index
    %9 = vector.load %arg3[%c0_9, %c0_10] : memref<1x4xf32, #tpu.memory_space<vmem>>, vector<1x4xf32>
    %10 = vector.broadcast %9 : vector<1x4xf32> to vector<2x4xf32>
    %11 = arith.addf %8, %10 : vector<2x4xf32>
    %cst_11 = arith.constant 0.000000e+00 : f32
    %12 = vector.broadcast %cst_11 : f32 to vector<2x4xf32>
    %13 = arith.cmpf oge, %11, %12 : vector<2x4xf32>
    %cst_12 = arith.constant 0.00999999977 : f32
    %14 = vector.broadcast %cst_12 : f32 to vector<2x4xf32>
    %15 = arith.mulf %14, %11 : vector<2x4xf32>
    %16 = arith.select %13, %11, %15 : vector<2x4xi1>, vector<2x4xf32>
    %cst_13 = arith.constant dense<0.000000e+00> : vector<2x8xf32>
    %17 = tpu.matmul %16, %7, %cst_13 {dimension_numbers = #tpu.dot_dimension_numbers<[1], [0], [0], [1], [0, 0, 1, 1], [], []>} : vector<2x4xf32>, vector<4x8xf32>, vector<2x8xf32> -> vector<2x8xf32>
    %c0_14 = arith.constant 0 : index
    %c0_15 = arith.constant 0 : index
    %18 = vector.load %arg5[%c0_14, %c0_15] : memref<1x8xf32, #tpu.memory_space<vmem>>, vector<1x8xf32>
    %19 = vector.broadcast %18 : vector<1x8xf32> to vector<2x8xf32>
    %20 = arith.addf %17, %19 : vector<2x8xf32>
    %21 = arith.negf %20 : vector<2x8xf32>
    %22 = math.exp %21 : vector<2x8xf32>
    %cst_16 = arith.constant 1.000000e+00 : f32
    %23 = vector.broadcast %cst_16 : f32 to vector<2x8xf32>
    %24 = arith.addf %23, %22 : vector<2x8xf32>
    %25 = arith.divf %23, %24 : vector<2x8xf32>
    %26 = vector.shape_cast %25 : vector<2x8xf32> to vector<2x8x1xf32>
    %c0_17 = arith.constant 0 : index
    %c0_18 = arith.constant 0 : index
    %c0_19 = arith.constant 0 : index
    %27 = vector.load %arg1[%c0_17, %c0_18, %c0_19] : memref<2x8x128xf32, #tpu.memory_space<vmem>>, vector<2x8x128xf32>
    %28 = vector.broadcast %26 : vector<2x8x1xf32> to vector<2x8x128xf32>
    %29 = arith.mulf %28, %27 : vector<2x8x128xf32>
    %c0_20 = arith.constant 0 : index
    %c0_21 = arith.constant 0 : index
    %c0_22 = arith.constant 0 : index
    %30 = vector.load %arg6[%c0_20, %c0_21, %c0_22] : memref<2x8x128xf32, #tpu.memory_space<vmem>>, vector<2x8x128xf32>
    tpu.vector_store %arg6[%c0_20, %c0_21, %c0_22], %29 {strides = array<i32>} : memref<2x8x128xf32, #tpu.memory_space<vmem>>, vector<2x8x128xf32>,
    return
  }
  func.func @transform_0(%arg0: i32) -> (i32, i32, i32) {
    %c0_i32 = arith.constant 0 : i32
    %c0_i32_0 = arith.constant 0 : i32
    %c0_i32_1 = arith.constant 0 : i32
    return %arg0, %c0_i32, %c0_i32_0 : i32, i32, i32
  }
  func.func @transform_1(%arg0: i32) -> (i32, i32) {
    %c0_i32 = arith.constant 0 : i32
    %c0_i32_0 = arith.constant 0 : i32
    %c0_i32_1 = arith.constant 0 : i32
    return %c0_i32, %c0_i32_0 : i32, i32
  }
  func.func @transform_2(%arg0: i32) -> (i32, i32) {
    %c0_i32 = arith.constant 0 : i32
    %c0_i32_0 = arith.constant 0 : i32
    %c0_i32_1 = arith.constant 0 : i32
    return %c0_i32, %c0_i32_0 : i32, i32
  }
  func.func @transform_3(%arg0: i32) -> (i32, i32) {
    %c0_i32 = arith.constant 0 : i32
    %c0_i32_0 = arith.constant 0 : i32
    %c0_i32_1 = arith.constant 0 : i32
    return %c0_i32, %c0_i32_0 : i32, i32
  }
  func.func @transform_4(%arg0: i32) -> (i32, i32) {
    %c0_i32 = arith.constant 0 : i32
    %c0_i32_0 = arith.constant 0 : i32
    %c0_i32_1 = arith.constant 0 : i32
    return %c0_i32, %c0_i32_0 : i32, i32
  }
  func.func @transform_5(%arg0: i32) -> (i32, i32, i32) {
    %c0_i32 = arith.constant 0 : i32
    %c0_i32_0 = arith.constant 0 : i32
    %c0_i32_1 = arith.constant 0 : i32
    return %arg0, %c0_i32, %c0_i32_0 : i32, i32, i32
  }
}

</mosaic_0001>

<llo_original>
// kernel: tpu_custom_call.1
$region0: #{tpu_custom_call.1}
  #allocation0 [shape = 'u32[]', space=smem, size = 0x4, offset = 0x4, fixed_abs, tag = 'smem constant byte address 0x4 - core index']
  #allocation1 [shape = 'u32[144,128]{1,0:T(1,128)}', space=vmem, size = 0x12000, scoped, tag = 'internal scratch']
  %s0 = inlined_call_operand.hbm [shape: f32[4,8,128], index: 0, kind: input, shape index: {}]
  %s1 = inlined_call_operand.vmem [shape: f32[8,4], index: 1, kind: input, shape index: {}]
  %s2 = inlined_call_operand.vmem [shape: f32[1,4], index: 2, kind: input, shape index: {}]
  %s3 = inlined_call_operand.vmem [shape: f32[4,8], index: 3, kind: input, shape index: {}]
  %s4 = inlined_call_operand.vmem [shape: f32[1,8], index: 4, kind: input, shape index: {}]
  %s5 = inlined_call_operand.hbm [shape: f32[4,8,128], index: 5, kind: output, shape index: {}]
  %s6 = sld [smem:[#allocation0]]
  $region57: #{tpu_custom_call.1} parent=0
    _
  %s8 = ssub.s32 1, %s6
  %s9 = scalar_select 0, %s8, %s6
  $region1: #{tpu_custom_call.1} parent=0
    #allocation2 [shape = 'u8[16384]{0}', space=vmem, size = 0x4000, scoped, tag = 'input window, operand 0']
    #allocation3 [shape = 's32[2]{0}', space=sflag, size = 0x8, scoped, tag = 'scoped memory for tpu_custom_call.1']
    #allocation4 [shape = 's32[2]{0}', space=sflag, size = 0x8, scoped, tag = 'scoped memory for tpu_custom_call.1']
    #allocation5 [shape = 'u8[16384]{0}', space=vmem, size = 0x4000, scoped, tag = 'output window, operand 0']
    %10 = vsyncpa [#allocation3], 0
    %s11 = scalar_lea.sflag [#allocation3], 1
    %12 = vsyncpa %s11, 0
    %13 = vsyncpa [#allocation4], 0
    %s14 = scalar_lea.sflag [#allocation4], 1
    %15 = vsyncpa %s14, 0
    loop: start=0, step=1, limit=4
    $region2: #{tpu_custom_call.1} parent=1 // loop_pre_header
      _
    $region3: #{tpu_custom_call.1} parent=1 // loop_header
      %s17 = sphi 0, %s21
      %p18 = scmp.ge.s32.totalorder %s17, 4
      %s27 = sphi 0, %s29
      %s30 = sphi 0, %s27
      %s31 = sphi 0, %s30
      %s47 = sphi 0, %s31
      %s51 = sphi 0, %s51
      %s53 = sphi 0, %s51
      %s54 = sphi 0, %s53
      %s68 = sphi 0, %s54
      %s72 = sphi 0, %s72
      %s74 = sphi 0, %s72
      %s75 = sphi 0, %s74
      %s89 = sphi 0, %s75
      %s93 = sphi 0, %s93
      %s95 = sphi 0, %s93
      %s96 = sphi 0, %s95
      %s110 = sphi 0, %s96
      %s114 = sphi 0, %s114
      %s116 = sphi 0, %s114
      %s117 = sphi 0, %s116
      %s131 = sphi 0, %s117
      %s137 = sphi 0, %s139
      %s140 = sphi 0, %s137
      %s141 = sphi 0, %s140
      %s157 = sphi 0, %s141
    $region4: #{tpu_custom_call.1} parent=1 // loop_header_branch
      %20 = sbr.rel (%p18) target = $region8
    $region5: #{tpu_custom_call.1} parent=1 // loop_body
      %s22 = ssub.s32 %s17, 1
      %s23 = ssub.s32 %s17, 2
      %s24 = sadd.s32 %s17, 1
      %s25 = ssub.s32 %s17, %s24
      %p26 = scmp.eq.s32.totalorder %s25, 0
      %s28 = sadd.s32 %s27, 1
      %s29 = scalar_select %p26, %s27, %s28
      %p32 = pneg %p26
      %p33 = scmp.eq.s32.totalorder %s17, 1
      %p34 = por %p32, %p33
      %p35 = scmp.ne.s32.totalorder %s27, %s30
      %p36 = scmp.eq.s32.totalorder %s17, 0
      %p37 = por %p35, %p36
      %p38 = scmp.ne.s32.totalorder %s27, %s30
      %p39 = scmp.eq.s32.totalorder %s22, 1
      %p40 = por %p38, %p39
      %p41 = scmp.ne.s32.totalorder %s30, %s31
      %p42 = scmp.eq.s32.totalorder %s22, 0
      %p43 = por %p41, %p42
      %p44 = scmp.ne.s32.totalorder %s30, %s31
      %p45 = scmp.eq.s32.totalorder %s23, 1
      %p46 = por %p44, %p45
      %p48 = scmp.ne.s32.totalorder %s31, %s47
      %p49 = scmp.eq.s32.totalorder %s23, 0
      %p50 = por %p48, %p49
      %s52 = sadd.s32 %s51, 1
      %p55 = scmp.eq.s32.totalorder %s17, 1
      %p56 = scmp.ne.s32.totalorder %s51, %s53
      %p57 = scmp.eq.s32.totalorder %s17, 0
      %p58 = por %p56, %p57
      %p59 = scmp.ne.s32.totalorder %s51, %s53
      %p60 = scmp.eq.s32.totalorder %s22, 1
      %p61 = por %p59, %p60
      %p62 = scmp.ne.s32.totalorder %s53, %s54
      %p63 = scmp.eq.s32.totalorder %s22, 0
      %p64 = por %p62, %p63
      %p65 = scmp.ne.s32.totalorder %s53, %s54
      %p66 = scmp.eq.s32.totalorder %s23, 1
      %p67 = por %p65, %p66
      %p69 = scmp.ne.s32.totalorder %s54, %s68
      %p70 = scmp.eq.s32.totalorder %s23, 0
      %p71 = por %p69, %p70
      %s73 = sadd.s32 %s72, 1
      %p76 = scmp.eq.s32.totalorder %s17, 1
      %p77 = scmp.ne.s32.totalorder %s72, %s74
      %p78 = scmp.eq.s32.totalorder %s17, 0
      %p79 = por %p77, %p78
      %p80 = scmp.ne.s32.totalorder %s72, %s74
      %p81 = scmp.eq.s32.totalorder %s22, 1
      %p82 = por %p80, %p81
      %p83 = scmp.ne.s32.totalorder %s74, %s75
      %p84 = scmp.eq.s32.totalorder %s22, 0
      %p85 = por %p83, %p84
      %p86 = scmp.ne.s32.totalorder %s74, %s75
      %p87 = scmp.eq.s32.totalorder %s23, 1
      %p88 = por %p86, %p87
      %p90 = scmp.ne.s32.totalorder %s75, %s89
      %p91 = scmp.eq.s32.totalorder %s23, 0
      %p92 = por %p90, %p91
      %s94 = sadd.s32 %s93, 1
      %p97 = scmp.eq.s32.totalorder %s17, 1
      %p98 = scmp.ne.s32.totalorder %s93, %s95
      %p99 = scmp.eq.s32.totalorder %s17, 0
      %p100 = por %p98, %p99
      %p101 = scmp.ne.s32.totalorder %s93, %s95
      %p102 = scmp.eq.s32.totalorder %s22, 1
      %p103 = por %p101, %p102
      %p104 = scmp.ne.s32.totalorder %s95, %s96
      %p105 = scmp.eq.s32.totalorder %s22, 0
      %p106 = por %p104, %p105
      %p107 = scmp.ne.s32.totalorder %s95, %s96
      %p108 = scmp.eq.s32.totalorder %s23, 1
      %p109 = por %p107, %p108
      %p111 = scmp.ne.s32.totalorder %s96, %s110
      %p112 = scmp.eq.s32.totalorder %s23, 0
      %p113 = por %p111, %p112
      %s115 = sadd.s32 %s114, 1
      %p118 = scmp.eq.s32.totalorder %s17, 1
      %p119 = scmp.ne.s32.totalorder %s114, %s116
      %p120 = scmp.eq.s32.totalorder %s17, 0
      %p121 = por %p119, %p120
      %p122 = scmp.ne.s32.totalorder %s114, %s116
      %p123 = scmp.eq.s32.totalorder %s22, 1
      %p124 = por %p122, %p123
      %p125 = scmp.ne.s32.totalorder %s116, %s117
      %p126 = scmp.eq.s32.totalorder %s22, 0
      %p127 = por %p125, %p126
      %p128 = scmp.ne.s32.totalorder %s116, %s117
      %p129 = scmp.eq.s32.totalorder %s23, 1
      %p130 = por %p128, %p129
      %p132 = scmp.ne.s32.totalorder %s117, %s131
      %p133 = scmp.eq.s32.totalorder %s23, 0
      %p134 = por %p132, %p133
      %s135 = ssub.s32 %s17, %s24
      %p136 = scmp.eq.s32.totalorder %s135, 0
      %s138 = sadd.s32 %s137, 1
      %s139 = scalar_select %p136, %s137, %s138
      %p142 = pneg %p136
      %p143 = scmp.eq.s32.totalorder %s17, 1
      %p144 = por %p142, %p143
      %p145 = scmp.ne.s32.totalorder %s137, %s140
      %p146 = scmp.eq.s32.totalorder %s17, 0
      %p147 = por %p145, %p146
      %p148 = scmp.ne.s32.totalorder %s137, %s140
      %p149 = scmp.eq.s32.totalorder %s22, 1
      %p150 = por %p148, %p149
      %p151 = scmp.ne.s32.totalorder %s140, %s141
      %p152 = scmp.eq.s32.totalorder %s22, 0
      %p153 = por %p151, %p152
      %p154 = scmp.ne.s32.totalorder %s140, %s141
      %p155 = scmp.eq.s32.totalorder %s23, 1
      %p156 = por %p154, %p155
      %p158 = scmp.ne.s32.totalorder %s141, %s157
      %p159 = scmp.eq.s32.totalorder %s23, 0
      %p160 = por %p158, %p159
      %p161 = scmp.le.s32.totalorder 1, %s17
      %p162 = scmp.lt.s32.totalorder %s17, 3
      %p163 = pnand %p161, %p162
      %p164 = pneg %p163
      // Predicated region
      $region9: #{tpu_custom_call.1} parent=5 // pred_check
        _
      $region10: #{tpu_custom_call.1} parent=5 // pred_check_branch
        %166 = sbr.rel (%p163) target = $region12
      $region11: #{tpu_custom_call.1} parent=5 // pred_region
        %s167 = ssub.s32 %s17, 1
        // Predicated region
        $region13: #{tpu_custom_call.1} parent=11 // pred_check
          %p168 = pneg %p64
        $region14: #{tpu_custom_call.1} parent=11 // pred_check_branch
          %170 = sbr.rel (%p168) target = $region16
        $region15: #{tpu_custom_call.1} parent=11 // pred_region
          _
        $region16: #{tpu_custom_call.1} parent=11 // pred_fallthru
          _
        // Predicated region
        $region17: #{tpu_custom_call.1} parent=11 // pred_check
          %p171 = pneg %p85
        $region18: #{tpu_custom_call.1} parent=11 // pred_check_branch
          %173 = sbr.rel (%p171) target = $region20
        $region19: #{tpu_custom_call.1} parent=11 // pred_region
          _
        $region20: #{tpu_custom_call.1} parent=11 // pred_fallthru
          _
        // Predicated region
        $region21: #{tpu_custom_call.1} parent=11 // pred_check
          %p174 = pneg %p106
        $region22: #{tpu_custom_call.1} parent=11 // pred_check_branch
          %176 = sbr.rel (%p174) target = $region24
        $region23: #{tpu_custom_call.1} parent=11 // pred_region
          _
        $region24: #{tpu_custom_call.1} parent=11 // pred_fallthru
          _
        // Predicated region
        $region25: #{tpu_custom_call.1} parent=11 // pred_check
          %p177 = pneg %p127
        $region26: #{tpu_custom_call.1} parent=11 // pred_check_branch
          %179 = sbr.rel (%p177) target = $region28
        $region27: #{tpu_custom_call.1} parent=11 // pred_region
          _
        $region28: #{tpu_custom_call.1} parent=11 // pred_fallthru
          _
      $region12: #{tpu_custom_call.1} parent=5 // pred_fallthru
        _
      %p180 = scmp.lt.s32.totalorder %s17, 2
      // Predicated region
      $region29: #{tpu_custom_call.1} parent=5 // pred_check
        %p181 = pneg %p180
      $region30: #{tpu_custom_call.1} parent=5 // pred_check_branch
        %183 = sbr.rel (%p181) target = $region32
      $region31: #{tpu_custom_call.1} parent=5 // pred_region
        // Predicated region
        $region33: #{tpu_custom_call.1} parent=31 // pred_check
          %p184 = pneg %p37
        $region34: #{tpu_custom_call.1} parent=31 // pred_check_branch
          %186 = sbr.rel (%p184) target = $region36
        $region35: #{tpu_custom_call.1} parent=31 // pred_region
          %s187 = sand.u32 %s27, 1
          %s188 = scalar_lea.sflag [#allocation3], %s187
          %s189 = sand.u32 %s27, 1
          %s190 = smul.addr %s189, 16
          %s191 = scalar_lea.vmem [#allocation2], %s190
          %s192 = smul.u32 2, %s17
          %s194 = ssub.s32 256, 256
          %195 = vsyncadd %s188, %s194
          %s196 = smul.addr %s192, 128
          %s197 = scalar_lea.hbm %s0, %s196
          %s198 = sshll.u32 %s191, 4
          %s199 = int_to_ptr.vmem [resolvable:$true] %s198
          %204 = dma.hbm_to_vmem [thread:$0]  %s197, 256, %s199, %s188, 128, 128, 8
        $region36: #{tpu_custom_call.1} parent=31 // pred_fallthru
          _
      $region32: #{tpu_custom_call.1} parent=5 // pred_fallthru
        _
      %p205 = scmp.le.s32.totalorder 1, %s17
      %p206 = scmp.lt.s32.totalorder %s17, 3
      %p207 = pnand %p205, %p206
      %p208 = pneg %p207
      // Predicated region
      $region37: #{tpu_custom_call.1} parent=5 // pred_check
        _
      $region38: #{tpu_custom_call.1} parent=5 // pred_check_branch
        %210 = sbr.rel (%p207) target = $region40
      $region39: #{tpu_custom_call.1} parent=5 // pred_region
        %s211 = ssub.s32 %s17, 1
        %s212 = sand.u32 %s30, 1
        %s213 = scalar_lea.sflag [#allocation3], %s212
        %s214 = sand.u32 %s30, 1
        %s215 = smul.addr %s214, 16
        %s216 = scalar_lea.vmem [#allocation2], %s215
        // Predicated region
        $region41: #{tpu_custom_call.1} parent=39 // pred_check
          %p217 = pneg %p43
        $region42: #{tpu_custom_call.1} parent=39 // pred_check_branch
          %219 = sbr.rel (%p217) target = $region44
        $region43: #{tpu_custom_call.1} parent=39 // pred_region
          %220 = dma.done %s213, 256
        $region44: #{tpu_custom_call.1} parent=39 // pred_fallthru
          _
        %s221 = sand.u32 %s30, 1
        %s222 = scalar_lea.sflag [#allocation3], %s221
        %s223 = sand.u32 %s30, 1
        %s224 = smul.addr %s223, 16
        %s225 = scalar_lea.vmem [#allocation2], %s224
        %p226 = pneg %p43
        %p227 = pneg %p40
        %p228 = pneg %p64
        %p229 = pneg %p61
        %p230 = pneg %p85
        %p231 = pneg %p82
        %p232 = pneg %p106
        %p233 = pneg %p103
        %p234 = pneg %p127
        %p235 = pneg %p124
        %p236 = pneg %p153
        %p237 = pneg %p150
        %s238 = sand.u32 %s140, 1
        %s239 = scalar_lea.sflag [#allocation4], %s238
        %s240 = sand.u32 %s140, 1
        %s241 = smul.addr %s240, 16
        %s242 = scalar_lea.vmem [#allocation5], %s241
        %s243 = smul.u32 2, %s22
        %s244 = smul.u32 2, %s22
        %v245 = vld [vmem:[%s216] sm:$0xff]
        %v246 = vld [vmem:[%s216 + $0x8] sm:$0xff]
        %247 = vadd.xlane.f32.xlu0 %v245
        %v248 = vpop.xlane.xlu0 %247
        %249 = vadd.xlane.f32.xlu0 %v246
        %v250 = vpop.xlane.xlu0 %249
        %v251 = vadd.f32 %v248, 0.0
        %v252 = vadd.f32 %v250, 0.0
        %v253 = vmul.f32 %v251, 0.0078125
        %v254 = vmul.f32 %v252, 0.0078125
        %v255 = vld [vmem:[%s1] sm:$0xff]
        %v256 = vld [vmem:[%s3] sm:$0xf]
        %v257 = vld [vmem:[%s2] sm:$0x1]
        %v259 = vlaneseq
        %v260 = vshrl.u32 %v259, 7
        %v261 = vsub.s32 0, %v260
        %v262 = vrot.slane %v257, %v261
        %v266 = vlaneseq
        %v267 = vand.u32 %v266, 127
        %v268 = vlaneseq
        %v269 = vshrl.u32 %v268, 7
        %v270 = vsub.s32 %v267, %v269
        %v271 = vrot.slane %v253, %v270
        %v272 = vlaneseq
        %v273 = vshrl.u32 %v272, 7
        %v274 = vsub.s32 %v267, %v273
        %v275 = vrot.slane %v254, %v274
        %vm276 = vcmask 1041409
        %v277 = vsel %vm276, %v275, %v271
        %vm278 = vcmask 64512
        %v279 = vsel %vm278, %v277, 0
        %281 = vmatprep.subr.mxu0 0.0
        %282 = vmatpush1.msra.mxu0 0.0
        %283 = vmatprep.subr.mxu0 0.0
        %284 = vmatpush1.msra.mxu0 0.0
        %285 = vmatprep.subr.mxu0 0.0
        %286 = vmatpush1.msra.mxu0 0.0
        %287 = vmatprep.subr.mxu0 0.0
        %288 = vmatpush1.msra.mxu0 0.0
        %289 = vmatprep.subr.mxu0 0.0
        %290 = vmatpush1.msra.mxu0 0.0
        %291 = vmatprep.subr.mxu0 0.0
        %292 = vmatpush1.msra.mxu0 0.0
        %293 = vmatprep.subr.mxu0 0.0
        %294 = vmatpush1.msra.mxu0 0.0
        %295 = vmatprep.subr.mxu0 0.0
        %296 = vmatpush1.msra.mxu0 0.0
        %297 = vmatprep.subr.mxu0 0.0
        %298 = vmatpush1.msra.mxu0 0.0
        %299 = vmatprep.subr.mxu0 0.0
        %300 = vmatpush1.msra.mxu0 0.0
        %301 = vmatprep.subr.mxu0 0.0
        %302 = vmatpush1.msra.mxu0 0.0
        %303 = vmatprep.subr.mxu0 0.0
        %304 = vmatpush1.msra.mxu0 0.0
        %305 = vmatprep.subr.mxu0 0.0
        %306 = vmatpush1.msra.mxu0 0.0
        %307 = vmatprep.subr.mxu0 0.0
        %308 = vmatpush1.msra.mxu0 0.0
        %309 = vmatprep.subr.mxu0 0.0
        %310 = vmatpush1.msra.mxu0 0.0
        %311 = vmatprep.subr.mxu0 0.0
        %312 = vmatpush1.msra.mxu0 %v255
        %313 = vmatprep.subr.mxu0 0.0
        %314 = vmatpush2.msra.mxu0 0.0
        %315 = vmatprep.subr.mxu0 0.0
        %316 = vmatpush2.msra.mxu0 0.0
        %317 = vmatprep.subr.mxu0 0.0
        %318 = vmatpush2.msra.mxu0 0.0
        %319 = vmatprep.subr.mxu0 0.0
        %320 = vmatpush2.msra.mxu0 0.0
        %321 = vmatprep.subr.mxu0 0.0
        %322 = vmatpush2.msra.mxu0 0.0
        %323 = vmatprep.subr.mxu0 0.0
        %324 = vmatpush2.msra.mxu0 0.0
        %325 = vmatprep.subr.mxu0 0.0
        %326 = vmatpush2.msra.mxu0 0.0
        %327 = vmatprep.subr.mxu0 0.0
        %328 = vmatpush2.msra.mxu0 0.0
        %329 = vmatprep.subr.mxu0 0.0
        %330 = vmatpush2.msra.mxu0 0.0
        %331 = vmatprep.subr.mxu0 0.0
        %332 = vmatpush2.msra.mxu0 0.0
        %333 = vmatprep.subr.mxu0 0.0
        %334 = vmatpush2.msra.mxu0 0.0
        %335 = vmatprep.subr.mxu0 0.0
        %336 = vmatpush2.msra.mxu0 0.0
        %337 = vmatprep.subr.mxu0 0.0
        %338 = vmatpush2.msra.mxu0 0.0
        %339 = vmatprep.subr.mxu0 0.0
        %340 = vmatpush2.msra.mxu0 0.0
        %341 = vmatprep.subr.mxu0 0.0
        %342 = vmatpush2.msra.mxu0 0.0
        %343 = vmatprep.subr.mxu0 0.0
        %344 = vmatpush2.msra.mxu0 0.0
        %345 = vmatprep.mubr.f32.mxu0 0.0
        %346 = vmatmul.mubr.f32.gmra.mxu0 %v279
        %v347 = vpop.f32.mrf.mxu0
        %v348 = vadd.f32 %v262, %v347
        %v349 = vpop.f32.mrf.mxu0
        %350 = vdwg.mxu0
        %vm351 = vcmp.ge.f32.partialorder %v348, 0.0
        %v352 = vmul.f32 %v348, 0.01
        %v353 = vsel %vm351, %v348, %v352
        %v354 = vld [vmem:[%s4] sm:$0x1]
        %v356 = vlaneseq
        %v357 = vshrl.u32 %v356, 7
        %v358 = vsub.s32 0, %v357
        %v359 = vrot.slane %v354, %v358
        %vm361 = vcmask 31744
        %v363 = vsel %vm361, %v353, 0
        %vm365 = vcmask 1043456
        %v367 = vsel %vm365, %v256, 0
        %369 = vmatprep.subr.mxu0 0.0
        %370 = vmatpush1.msra.mxu0 0.0
        %371 = vmatprep.subr.mxu0 0.0
        %372 = vmatpush1.msra.mxu0 0.0
        %373 = vmatprep.subr.mxu0 0.0
        %374 = vmatpush1.msra.mxu0 0.0
        %375 = vmatprep.subr.mxu0 0.0
        %376 = vmatpush1.msra.mxu0 0.0
        %377 = vmatprep.subr.mxu0 0.0
        %378 = vmatpush1.msra.mxu0 0.0
        %379 = vmatprep.subr.mxu0 0.0
        %380 = vmatpush1.msra.mxu0 0.0
        %381 = vmatprep.subr.mxu0 0.0
        %382 = vmatpush1.msra.mxu0 0.0
        %383 = vmatprep.subr.mxu0 0.0
        %384 = vmatpush1.msra.mxu0 0.0
        %385 = vmatprep.subr.mxu0 0.0
        %386 = vmatpush1.msra.mxu0 0.0
        %387 = vmatprep.subr.mxu0 0.0
        %388 = vmatpush1.msra.mxu0 0.0
        %389 = vmatprep.subr.mxu0 0.0
        %390 = vmatpush1.msra.mxu0 0.0
        %391 = vmatprep.subr.mxu0 0.0
        %392 = vmatpush1.msra.mxu0 0.0
        %393 = vmatprep.subr.mxu0 0.0
        %394 = vmatpush1.msra.mxu0 0.0
        %395 = vmatprep.subr.mxu0 0.0
        %396 = vmatpush1.msra.mxu0 0.0
        %397 = vmatprep.subr.mxu0 0.0
        %398 = vmatpush1.msra.mxu0 0.0
        %399 = vmatprep.subr.mxu0 0.0
        %400 = vmatpush1.msra.mxu0 %v367
        %401 = vmatprep.subr.mxu0 0.0
        %402 = vmatpush2.msra.mxu0 0.0
        %403 = vmatprep.subr.mxu0 0.0
        %404 = vmatpush2.msra.mxu0 0.0
        %405 = vmatprep.subr.mxu0 0.0
        %406 = vmatpush2.msra.mxu0 0.0
        %407 = vmatprep.subr.mxu0 0.0
        %408 = vmatpush2.msra.mxu0 0.0
        %409 = vmatprep.subr.mxu0 0.0
        %410 = vmatpush2.msra.mxu0 0.0
        %411 = vmatprep.subr.mxu0 0.0
        %412 = vmatpush2.msra.mxu0 0.0
        %413 = vmatprep.subr.mxu0 0.0
        %414 = vmatpush2.msra.mxu0 0.0
        %415 = vmatprep.subr.mxu0 0.0
        %416 = vmatpush2.msra.mxu0 0.0
        %417 = vmatprep.subr.mxu0 0.0
        %418 = vmatpush2.msra.mxu0 0.0
        %419 = vmatprep.subr.mxu0 0.0
        %420 = vmatpush2.msra.mxu0 0.0
        %421 = vmatprep.subr.mxu0 0.0
        %422 = vmatpush2.msra.mxu0 0.0
        %423 = vmatprep.subr.mxu0 0.0
        %424 = vmatpush2.msra.mxu0 0.0
        %425 = vmatprep.subr.mxu0 0.0
        %426 = vmatpush2.msra.mxu0 0.0
        %427 = vmatprep.subr.mxu0 0.0
        %428 = vmatpush2.msra.mxu0 0.0
        %429 = vmatprep.subr.mxu0 0.0
        %430 = vmatpush2.msra.mxu0 0.0
        %431 = vmatprep.subr.mxu0 0.0
        %432 = vmatpush2.msra.mxu0 0.0
        %433 = vmatprep.mubr.f32.mxu0 0.0
        %434 = vmatmul.mubr.f32.gmra.mxu0 %v363
        %v435 = vpop.f32.mrf.mxu0
        %v436 = vadd.f32 %v359, %v435
        %v437 = vpop.f32.mrf.mxu0
        %438 = vdwg.mxu0
        %v439 = vxor.u32 %v436, 2147483648
        %v440 = vmul.f32 %v439, 1.442695
        %v441 = vpow.pop %v440
        %v442 = vadd.f32 %v441, 1.0
        %v443 = vrcp.pop %v442
        %v444 = vmul.f32 1.0, %v443
        %v445 = vlaneseq
        %v446 = vshrl.u32 %v445, 7
        %v447 = vsub.s32 0, %v446
        %v448 = vrot.slane %v444, %v447
        %450 = vbcast.lane.b32.xlu0 %v448, 256
        %v451 = vpop.permute.xlu0 %450
        %v452 = vlaneseq
        %v453 = vshrl.u32 %v452, 7
        %v454 = vsub.s32 1, %v453
        %v455 = vrot.slane %v444, %v454
        %457 = vbcast.lane.b32.xlu0 %v455, 256
        %v458 = vpop.permute.xlu0 %457
        %v459 = vmul.f32 %v451, %v245
        %v460 = vmul.f32 %v458, %v246
        %461 = vst [vmem:[%s242] sm:$0xff] %v459
        %462 = vst [vmem:[%s242 + $0x8] sm:$0xff] %v460
        %s463 = sand.u32 %s140, 1
        %s464 = scalar_lea.sflag [#allocation4], %s463
        %s465 = sand.u32 %s140, 1
        %s466 = smul.addr %s465, 16
        %s467 = scalar_lea.vmem [#allocation5], %s466
        // Predicated region
        $region45: #{tpu_custom_call.1} parent=39 // pred_check
          %p468 = pneg %p150
        $region46: #{tpu_custom_call.1} parent=39 // pred_check_branch
          %470 = sbr.rel (%p468) target = $region48
        $region47: #{tpu_custom_call.1} parent=39 // pred_region
          %s471 = smul.u32 2, %s22
          %s473 = ssub.s32 256, 256
          %474 = vsyncadd %s464, %s473
          %s475 = smul.addr %s471, 128
          %s476 = scalar_lea.hbm %s5, %s475
          %s477 = sshll.u32 %s467, 4
          %s478 = int_to_ptr.vmem [resolvable:$true] %s477
          %483 = dma.vmem_to_hbm [thread:$0]  %s478, 256, %s476, %s464, 128, 128, 8
        $region48: #{tpu_custom_call.1} parent=39 // pred_fallthru
          _
      $region40: #{tpu_custom_call.1} parent=5 // pred_fallthru
        _
      %p484 = scmp.le.s32.totalorder 2, %s17
      // Predicated region
      $region49: #{tpu_custom_call.1} parent=5 // pred_check
        %p485 = pneg %p484
      $region50: #{tpu_custom_call.1} parent=5 // pred_check_branch
        %487 = sbr.rel (%p485) target = $region52
      $region51: #{tpu_custom_call.1} parent=5 // pred_region
        %s488 = ssub.s32 %s17, 2
        // Predicated region
        $region53: #{tpu_custom_call.1} parent=51 // pred_check
          %p489 = pneg %p156
        $region54: #{tpu_custom_call.1} parent=51 // pred_check_branch
          %491 = sbr.rel (%p489) target = $region56
        $region55: #{tpu_custom_call.1} parent=51 // pred_region
          %s492 = sand.u32 %s141, 1
          %s493 = scalar_lea.sflag [#allocation4], %s492
          %s494 = sand.u32 %s141, 1
          %s495 = smul.addr %s494, 16
          %s496 = scalar_lea.vmem [#allocation5], %s495
          %497 = dma.done %s493, 256
        $region56: #{tpu_custom_call.1} parent=51 // pred_fallthru
          _
      $region52: #{tpu_custom_call.1} parent=5 // pred_fallthru
        _
    $region6: #{tpu_custom_call.1} parent=1 // loop_footer
      %s21 = sadd.s32 1, %s17
    $region7: #{tpu_custom_call.1} parent=1 // loop_footer_branch
      %16 = sbr.rel target = $region3
    $region8: #{tpu_custom_call.1} parent=1 // loop_exit
      _
    %498 = vsyncpa [#allocation3], 1
    %s499 = scalar_lea.sflag [#allocation3], 1
    %500 = vsyncpa %s499, 1
    %501 = vsyncpa [#allocation4], 1
    %s502 = scalar_lea.sflag [#allocation4], 1
    %503 = vsyncpa %s502, 1

</llo_original>
